<compile_context>
chip_gen: v5e
topology: v5e:2x2
jax: 0.10.0
libtpu: 0.0.40
codegen_flags: <defaults>
</compile_context>

<pallas_src>
import functools

import jax
import jax.numpy as jnp
from jax.experimental import pallas as pl
from jax.experimental.pallas import tpu as pltpu

TILE_BYTES_TARGET = 4 * 1024 * 1024   # ~4 MiB streamed per grid step


def _round_up(a, b):
    return ((a + b - 1) // b) * b


def _vmem_capacity_bytes():
    try:
        return int(pltpu.get_tpu_info().vmem_capacity_bytes)
    except Exception:
        return 64 * 1024 * 1024        # conservative: v7x physical VMEM


def _native_sublanes(dtype):
    # native sublane packing: 8 rows for 4-byte, 16 for 2-byte, 32 for 1-byte
    return {4: 8, 2: 16, 1: 32}.get(jnp.dtype(dtype).itemsize, 8)


# ---------------------------------------------------------------------------
# Kernels
# ---------------------------------------------------------------------------

def _resident_centered_kernel(x_ref, o_ref, slab_ref, acc_ref, *,
                              rows, tile_rows, inv_n, ragged):
    """Single-pass path.

    Grid = (2, num_tiles).  Phase 0: stream tile from HBM, cache it in the
    VMEM slab, accumulate the f32 column sums.  Phase 1: re-read the cached
    tile from VMEM, subtract the mean, write the output tile.  The input
    index_map holds the last block during phase 1, so each element is DMA'd
    from HBM exactly once (2N total HBM traffic).
    """
    p = pl.program_id(0)          # phase: 0 = load+sum+cache, 1 = center+store
    i = pl.program_id(1)          # tile index

    @pl.when((p == 0) & (i == 0))
    def _():
        acc_ref[...] = jnp.zeros_like(acc_ref)

    r0 = pl.multiple_of(i * tile_rows, tile_rows)

    @pl.when(p == 0)
    def _():
        x = x_ref[...]
        slab_ref[pl.ds(r0, tile_rows), :] = x            # cache raw tile
        xf = x.astype(jnp.float32)
        if ragged:                                       # mask garbage rows of the
            row = i * tile_rows + jax.lax.broadcasted_iota(  # partial last tile
                jnp.int32, x.shape, 0)
            xf = jnp.where(row < rows, xf, 0.0)
        acc_ref[...] += jnp.sum(xf, axis=0, keepdims=True)   # (1, LANES) vector acc

    @pl.when(p == 1)
    def _():
        mean = jnp.sum(acc_ref[...]) * inv_n             # divide by TRUE n
        xc = slab_ref[pl.ds(r0, tile_rows), :].astype(jnp.float32)
        o_ref[...] = (xc - mean).astype(o_ref.dtype)


def _partial_sums_kernel(x_ref, psum_ref, acc_ref, *,
                         rows, tile_rows, tiles_per_core, mask):
    """Two-pass path, pass 1: per-core partial column sums.

    Grid = (2, tiles_per_core); the leading "parallel" axis is sharded across
    the two TensorCores on v7x.  Each core keeps a resident (8, LANES) f32
    accumulator (row 0 carries the data, rows 1..7 stay zero) and emits it as
    its own (8, LANES) slice of the output.
    """
    c = pl.program_id(0)          # virtual core id
    i = pl.program_id(1)          # tile index within this core's range

    @pl.when(i == 0)
    def _():
        acc_ref[...] = jnp.zeros_like(acc_ref)

    xf = x_ref[...].astype(jnp.float32)
    if mask:                      # ragged last tile and/or odd tile count
        t = c * tiles_per_core + i
        row = t * tile_rows + jax.lax.broadcasted_iota(jnp.int32, x_ref.shape, 0)
        xf = jnp.where(row < rows, xf, 0.0)
    acc_ref[0:1, :] += jnp.sum(xf, axis=0, keepdims=True)

    @pl.when(i == tiles_per_core - 1)
    def _():
        psum_ref[...] = acc_ref[...]


def _subtract_mean_kernel(mean_ref, x_ref, o_ref):
    """Two-pass path, pass 2: tile-parallel subtract; mean comes in via SMEM."""
    mean = mean_ref[0, 0]                                 # f32 scalar splat
    o_ref[...] = (x_ref[...].astype(jnp.float32) - mean).astype(o_ref.dtype)


# ---------------------------------------------------------------------------
# Wrapper
# ---------------------------------------------------------------------------

def centered_layer(x, *, force_tiled=False, tile_bytes_target=TILE_BYTES_TARGET):
    """X - X.mean() over all elements (CenteredLayer.forward)."""
    orig_shape = x.shape
    orig_dtype = x.dtype
    n = x.size
    if n == 0:
        return x

    itemsize = jnp.dtype(orig_dtype).itemsize
    sublanes = _native_sublanes(orig_dtype)

    # Lane-dense 2-D view.  Prefer the widest lane count that needs NO padding
    # (avoids a full-array pad copy and the matching output slice copy).
    lanes = None
    for cand in (512, 256, 128):
        if n % (cand * 8) == 0:
            lanes = cand
            break
    if lanes is None:
        lanes = 512
        n_pad = _round_up(n, lanes * sublanes)   # dtype-native sublane multiple
        flat = jnp.pad(x.reshape(-1), (0, n_pad - n))     # zeros: sum unchanged
        padded = True
    else:
        n_pad = n
        flat = x.reshape(-1)
        padded = False

    rows = n_pad // lanes
    x2d = flat.reshape(rows, lanes)

    tile_rows_max = max(
        sublanes, (tile_bytes_target // (lanes * itemsize)) // sublanes * sublanes)
    tile_rows = min(rows, tile_rows_max)          # full dim if rows < max
    num_tiles = -(-rows // tile_rows)
    ragged = (rows % tile_rows) != 0
    tile_bytes = tile_rows * lanes * itemsize
    f32_tile_bytes = tile_rows * lanes * 4
    inv_n = 1.0 / n

    vmem_cap = _vmem_capacity_bytes()
    resident_limit = min(int(0.80 * vmem_cap), 112 * 1024 * 1024)
    tiled_limit = min(int(0.65 * vmem_cap), 64 * 1024 * 1024)

    slab_rows = num_tiles * tile_rows
    slab_bytes = slab_rows * lanes * itemsize
    # slab + double-buffered in/out tiles + f32 temporaries + margin
    resident_need = slab_bytes + 4 * tile_bytes + 6 * f32_tile_bytes + (2 << 20)

    if (not force_tiled) and resident_need <= resident_limit:
        # ---------------- Single-pass resident path (2N HBM traffic) --------
        out2d = pl.pallas_call(
            functools.partial(_resident_centered_kernel, rows=rows,
                              tile_rows=tile_rows, inv_n=inv_n, ragged=ragged),
            out_shape=jax.ShapeDtypeStruct((rows, lanes), orig_dtype),
            grid_spec=pltpu.PrefetchScalarGridSpec(
                num_scalar_prefetch=0,
                grid=(2, num_tiles),
                # phase 0: walk the tiles; phase 1: hold the last block -> the
                # pipeline issues no new input DMAs during phase 1.
                in_specs=[pl.BlockSpec(
                    (tile_rows, lanes),
                    lambda p, i: ((1 - p) * i + p * (num_tiles - 1), 0))],
                # phase 0: park on block 0 (never written); phase 1: walk tiles.
                out_specs=pl.BlockSpec((tile_rows, lanes),
                                       lambda p, i: (p * i, 0)),
                scratch_shapes=[pltpu.VMEM((slab_rows, lanes), orig_dtype),
                                pltpu.VMEM((1, lanes), jnp.float32)],
            ),
            compiler_params=pltpu.CompilerParams(
                dimension_semantics=("arbitrary", "arbitrary"),
                vmem_limit_bytes=resident_limit,
            ),
            cost_estimate=pl.CostEstimate(
                flops=2 * n, transcendentals=0,
                bytes_accessed=2 * n * itemsize),
        )(x2d)
    else:
        # ---------------- Two-pass tiled path (large tensors) ----------------
        ncores = 2
        tiles_per_core = -(-num_tiles // ncores)
        need_mask = ragged or (num_tiles % ncores != 0)

        # Pass 1: per-core partial sums (outer axis "parallel" -> both TCs on
        # v7x), resident f32 vector accumulator per core.
        partials = pl.pallas_call(
            functools.partial(_partial_sums_kernel, rows=rows,
                              tile_rows=tile_rows,
                              tiles_per_core=tiles_per_core, mask=need_mask),
            out_shape=jax.ShapeDtypeStruct((ncores * 8, lanes), jnp.float32),
            grid_spec=pltpu.PrefetchScalarGridSpec(
                num_scalar_prefetch=0,
                grid=(ncores, tiles_per_core),
                in_specs=[pl.BlockSpec(
                    (tile_rows, lanes),
                    lambda c, i: (jnp.minimum(c * tiles_per_core + i,
                                              num_tiles - 1), 0))],
                out_specs=pl.BlockSpec((8, lanes), lambda c, i: (c, 0)),
                scratch_shapes=[pltpu.VMEM((8, lanes), jnp.float32)],
            ),
            compiler_params=pltpu.CompilerParams(
                dimension_semantics=("parallel", "arbitrary"),
                vmem_limit_bytes=tiled_limit,
            ),
            cost_estimate=pl.CostEstimate(
                flops=n, transcendentals=0,
                bytes_accessed=n * itemsize),
        )(x2d)

        # Finish the mean in the wrapper (tiny XLA op); rows 1..7 of each
        # per-core slice are zeros, so a plain sum is exact.
        mean = (jnp.sum(partials, dtype=jnp.float32) * inv_n)
        mean = mean.astype(jnp.float32).reshape(1, 1)

        # Pass 2: tile-parallel subtract; scalar mean delivered via SMEM.
        out2d = pl.pallas_call(
            _subtract_mean_kernel,
            out_shape=jax.ShapeDtypeStruct((rows, lanes), orig_dtype),
            grid_spec=pl.GridSpec(
                grid=(num_tiles,),
                in_specs=[
                    pl.BlockSpec(memory_space=pltpu.MemorySpace.SMEM),
                    pl.BlockSpec((tile_rows, lanes), lambda i: (i, 0)),
                ],
                out_specs=pl.BlockSpec((tile_rows, lanes), lambda i: (i, 0)),
            ),
            compiler_params=pltpu.CompilerParams(
                dimension_semantics=("parallel",),
                vmem_limit_bytes=tiled_limit,
            ),
            cost_estimate=pl.CostEstimate(
                flops=2 * n, transcendentals=0,
                bytes_accessed=2 * n * itemsize),
        )(mean, x2d)

    if padded:
        return out2d.reshape(-1)[:n].reshape(orig_shape)
    return out2d.reshape(orig_shape)


if __name__ == "__main__":
    key = jax.random.PRNGKey(0)
    k1, k2, k3, k4 = jax.random.split(key, 4)

    # 1) Small NCHW f32 activation -> resident single-pass path (one tile).
    x = jax.random.normal(k1, (2, 4, 16, 16), dtype=jnp.float32)
    y = jax.block_until_ready(centered_layer(x))
    y_ref = x - jnp.mean(x)
    assert y.shape == x.shape and y.dtype == x.dtype
    assert jnp.allclose(y, y_ref, atol=1e-5, rtol=1e-5)
    assert abs(float(jnp.mean(y))) < 1e-5

    # 2) Resident path with several tiles and a ragged last tile
    #    (small tile target just to exercise multi-tile caching + masking).
    x2 = jax.random.normal(k2, (4, 16, 64, 96), dtype=jnp.float32)
    y2_ref = x2 - jnp.mean(x2)
    y2a = jax.block_until_ready(
        centered_layer(x2, tile_bytes_target=80 * 512 * 4))
    assert jnp.allclose(y2a, y2_ref, atol=1e-4, rtol=1e-4)

    # 3) Two-pass tiled path: 2-way "parallel" pass-1 reduction, ragged tiles,
    #    SMEM-scalar mean in pass 2, no pad / no slice (size is lane-aligned).
    y2b = jax.block_until_ready(
        centered_layer(x2, force_tiled=True, tile_bytes_target=80 * 512 * 4))
    assert y2b.shape == x2.shape and y2b.dtype == x2.dtype
    assert jnp.allclose(y2b, y2_ref, atol=1e-4, rtol=1e-4)
    assert abs(float(jnp.mean(y2b))) < 1e-4

    # 4) bf16 I/O with in-kernel f32 accumulation (HBM traffic stays bf16).
    x3 = jax.random.normal(k3, (2, 4, 16, 16), dtype=jnp.float32).astype(jnp.bfloat16)
    y3 = jax.block_until_ready(centered_layer(x3))
    x3f = x3.astype(jnp.float32)
    y3_ref = (x3f - jnp.mean(x3f)).astype(jnp.bfloat16)
    assert y3.shape == x3.shape and y3.dtype == jnp.bfloat16
    assert jnp.allclose(y3.astype(jnp.float32), y3_ref.astype(jnp.float32),
                        atol=2e-2, rtol=2e-2)

    # 5) Non-lane-aligned size -> minimal zero-pad fallback (pad sliced off).
    x4 = jax.random.normal(k4, (3, 5, 7), dtype=jnp.float32)
    y4 = jax.block_until_ready(centered_layer(x4))
    y4_ref = x4 - jnp.mean(x4)
    assert y4.shape == x4.shape
    assert jnp.allclose(y4, y4_ref, atol=1e-5, rtol=1e-5)

    # 6) The spec's own example: X = arange(4).
    x5 = jnp.arange(4, dtype=jnp.float32)
    y5 = jax.block_until_ready(centered_layer(x5))
    assert jnp.allclose(y5, x5 - jnp.mean(x5), atol=1e-6)

    print("KERNEL_OK")
</pallas_src>

<mosaic_0001>
module attributes {stable_mosaic.version = 11 : i64} {
  func.func @_resident_centered_kernel(%arg0: i32, %arg1: i32, %arg2: memref<8x256xf32, #tpu.memory_space<vmem>>, %arg3: memref<8x256xf32, #tpu.memory_space<vmem>>, %arg4: memref<8x256xf32, #tpu.memory_space<vmem>>, %arg5: memref<1x256xf32, #tpu.memory_space<vmem>>) attributes {dimension_semantics = [#tpu.dimension_semantics<arbitrary>, #tpu.dimension_semantics<arbitrary>], iteration_bounds = array<i64: 2, 1>, scalar_prefetch = 0 : i64, scratch_operands = 2 : i64, tpu.core_type = #tpu.core_type<tc>, window_params = [{transform_indices = @transform_0, window_bounds = array<i64: 8, 256>}, {transform_indices = @transform_1, window_bounds = array<i64: 8, 256>}]} {
    %c0_i32 = arith.constant 0 : i32
    %0 = arith.cmpi eq, %arg0, %c0_i32 : i32
    %c0_i32_0 = arith.constant 0 : i32
    %1 = arith.cmpi eq, %arg1, %c0_i32_0 : i32
    %2 = arith.andi %0, %1 : i1
    %3 = arith.extui %2 : i1 to i32
    %c0_i32_1 = arith.constant 0 : i32
    %4 = arith.cmpi ne, %3, %c0_i32_1 : i32
    scf.if %4 {
      %cst = arith.constant 0.000000e+00 : f32
      %13 = vector.broadcast %cst : f32 to vector<1x256xf32>
      %c0 = arith.constant 0 : index
      %c0_5 = arith.constant 0 : index
      %14 = vector.load %arg5[%c0, %c0_5] : memref<1x256xf32, #tpu.memory_space<vmem>>, vector<1x256xf32>
      tpu.vector_store %arg5[%c0, %c0_5], %13 {strides = array<i32>} : memref<1x256xf32, #tpu.memory_space<vmem>>, vector<1x256xf32>,
    } else {
    }
    %c8_i32 = arith.constant 8 : i32
    %5 = arith.muli %arg1, %c8_i32 : i32
    %6 = tpu.assume_multiple %5, 8 : i32
    %c0_i32_2 = arith.constant 0 : i32
    %7 = arith.cmpi eq, %arg0, %c0_i32_2 : i32
    %8 = arith.extui %7 : i1 to i32
    %c0_i32_3 = arith.constant 0 : i32
    %9 = arith.cmpi ne, %8, %c0_i32_3 : i32
    scf.if %9 {
      %c0 = arith.constant 0 : index
      %c0_5 = arith.constant 0 : index
      %13 = vector.load %arg2[%c0, %c0_5] : memref<8x256xf32, #tpu.memory_space<vmem>>, vector<8x256xf32>
      %14 = arith.index_cast %6 : i32 to index
      %c0_6 = arith.constant 0 : index
      %15 = vector.load %arg4[%14, %c0_6] : memref<8x256xf32, #tpu.memory_space<vmem>>, vector<8x256xf32>
      tpu.vector_store %arg4[%14, %c0_6], %13 {strides = array<i32>} : memref<8x256xf32, #tpu.memory_space<vmem>>, vector<8x256xf32>,
      %c0_7 = arith.constant 0 : index
      %c0_8 = arith.constant 0 : index
      %16 = vector.load %arg5[%c0_7, %c0_8] : memref<1x256xf32, #tpu.memory_space<vmem>>, vector<1x256xf32>
      %cst = arith.constant dense<0.000000e+00> : vector<256xf32>
      %17 = vector.multi_reduction <add>, %13, %cst [0] : vector<8x256xf32> to vector<256xf32>
      %18 = vector.shape_cast %17 : vector<256xf32> to vector<1x256xf32>
      %19 = arith.addf %16, %18 : vector<1x256xf32>
      %c0_9 = arith.constant 0 : index
      %c0_10 = arith.constant 0 : index
      %20 = vector.load %arg5[%c0_9, %c0_10] : memref<1x256xf32, #tpu.memory_space<vmem>>, vector<1x256xf32>
      tpu.vector_store %arg5[%c0_9, %c0_10], %19 {strides = array<i32>} : memref<1x256xf32, #tpu.memory_space<vmem>>, vector<1x256xf32>,
    } else {
    }
    %c1_i32 = arith.constant 1 : i32
    %10 = arith.cmpi eq, %arg0, %c1_i32 : i32
    %11 = arith.extui %10 : i1 to i32
    %c0_i32_4 = arith.constant 0 : i32
    %12 = arith.cmpi ne, %11, %c0_i32_4 : i32
    scf.if %12 {
      %c0 = arith.constant 0 : index
      %c0_5 = arith.constant 0 : index
      %13 = vector.load %arg5[%c0, %c0_5] : memref<1x256xf32, #tpu.memory_space<vmem>>, vector<1x256xf32>
      %14 = vector.shape_cast %13 : vector<1x256xf32> to vector<1x1x256xf32>
      %cst = arith.constant dense<0.000000e+00> : vector<1xf32>
      %15 = vector.multi_reduction <add>, %14, %cst [1, 2] : vector<1x1x256xf32> to vector<1xf32>
      %16 = vector.shape_cast %15 : vector<1xf32> to vector<1x1x1xf32>
      %17 = vector.extract %16[0, 0, 0] : f32 from vector<1x1x1xf32>
      %cst_6 = arith.constant 4.8828125E-4 : f32
      %18 = arith.mulf %17, %cst_6 : f32
      %19 = arith.index_cast %6 : i32 to index
      %c0_7 = arith.constant 0 : index
      %20 = vector.load %arg4[%19, %c0_7] : memref<8x256xf32, #tpu.memory_space<vmem>>, vector<8x256xf32>
      %21 = vector.broadcast %18 : f32 to vector<8x256xf32>
      %22 = arith.subf %20, %21 : vector<8x256xf32>
      %c0_8 = arith.constant 0 : index
      %c0_9 = arith.constant 0 : index
      %23 = vector.load %arg3[%c0_8, %c0_9] : memref<8x256xf32, #tpu.memory_space<vmem>>, vector<8x256xf32>
      tpu.vector_store %arg3[%c0_8, %c0_9], %22 {strides = array<i32>} : memref<8x256xf32, #tpu.memory_space<vmem>>, vector<8x256xf32>,
    } else {
    }
    return
  }
  func.func @transform_0(%arg0: i32, %arg1: i32) -> (i32, i32) {
    %c1_i32 = arith.constant 1 : i32
    %0 = arith.subi %c1_i32, %arg0 : i32
    %1 = arith.muli %0, %arg1 : i32
    %c0_i32 = arith.constant 0 : i32
    %2 = arith.muli %arg0, %c0_i32 : i32
    %3 = arith.addi %1, %2 : i32
    %c0_i32_0 = arith.constant 0 : i32
    %c0_i32_1 = arith.constant 0 : i32
    return %3, %c0_i32_0 : i32, i32
  }
  func.func @transform_1(%arg0: i32, %arg1: i32) -> (i32, i32) {
    %0 = arith.muli %arg0, %arg1 : i32
    %c0_i32 = arith.constant 0 : i32
    %c0_i32_0 = arith.constant 0 : i32
    return %0, %c0_i32 : i32, i32
  }
}

</mosaic_0001>

<llo_original>
// kernel: tpu_custom_call.1
$region0: #{tpu_custom_call.1}
  #allocation0 [shape = 'u32[]', space=smem, size = 0x4, offset = 0x4, fixed_abs, tag = 'smem constant byte address 0x4 - core index']
  #allocation1 [shape = 'u32[72,128]{1,0:T(1,128)}', space=vmem, size = 0x9000, scoped, tag = 'internal scratch']
  #allocation2 [shape = 'f32[8,256]{1,0:T(8,128)}', space=vmem, size = 0x2000, scoped, tag = 'scratch operand']
  #allocation3 [shape = 'f32[1,256]{1,0:T(1,128)}', space=vmem, size = 0x400, scoped, tag = 'scratch operand']
  %s0 = inlined_call_operand.hbm [shape: f32[8,256], index: 0, kind: input, shape index: {}]
  %s1 = inlined_call_operand.hbm [shape: f32[8,256], index: 1, kind: output, shape index: {}]
  %s2 = sld [smem:[#allocation0]]
  $region53: #{tpu_custom_call.1} parent=0
    _
  %s4 = ssub.s32 1, %s2
  %s5 = scalar_select 0, %s4, %s2
  $region1: #{tpu_custom_call.1} parent=0
    #allocation4 [shape = 'u8[16384]{0}', space=vmem, size = 0x4000, scoped, tag = 'input window, operand 0']
    #allocation5 [shape = 's32[2]{0}', space=sflag, size = 0x8, scoped, tag = 'scoped memory for tpu_custom_call.1']
    #allocation6 [shape = 's32[2]{0}', space=sflag, size = 0x8, scoped, tag = 'scoped memory for tpu_custom_call.1']
    #allocation7 [shape = 'u8[16384]{0}', space=vmem, size = 0x4000, scoped, tag = 'output window, operand 0']
    %6 = vsyncpa [#allocation5], 0
    %s7 = scalar_lea.sflag [#allocation5], 1
    %8 = vsyncpa %s7, 0
    %9 = vsyncpa [#allocation6], 0
    %s10 = scalar_lea.sflag [#allocation6], 1
    %11 = vsyncpa %s10, 0
    loop: start=0, step=1, limit=4
    $region2: #{tpu_custom_call.1} parent=1 // loop_pre_header
      _
    $region3: #{tpu_custom_call.1} parent=1 // loop_header
      %s13 = sphi 0, %s17
      %p14 = scmp.ge.s32.totalorder %s13, 4
      %s20 = sphi 0, %s32
      %s21 = sphi 0, %s28
      %s22 = sphi 0, %s20
      %s23 = sphi 0, %s21
      %s24 = sphi 0, %s22
      %s25 = sphi 0, %s23
      %s39 = sphi 0, %s41
      %s42 = sphi 0, %s39
      %s43 = sphi 0, %s42
      %s59 = sphi 0, %s43
      %s67 = sphi 0, %s69
      %s70 = sphi 0, %s67
      %s71 = sphi 0, %s70
      %s87 = sphi 0, %s71
    $region4: #{tpu_custom_call.1} parent=1 // loop_header_branch
      %16 = sbr.rel (%p14) target = $region8
    $region5: #{tpu_custom_call.1} parent=1 // loop_body
      %s18 = ssub.s32 %s13, 1
      %s19 = ssub.s32 %s13, 2
      %s26 = sadd.s32 1, %s21
      %p27 = scmp.ge.s32.totalorder %s26, 1
      %s28 = scalar_select %p27, 0, %s26
      %s29 = sadd.s32 1, %s20
      %s30 = scalar_select %p27, %s29, %s20
      %p31 = scmp.ge.s32.totalorder %s30, 2
      %s32 = scalar_select %p31, 0, %s30
      %s33 = ssub.s32 1, %s20
      %s34 = smul.u32 %s33, %s21
      %s35 = ssub.s32 1, %s32
      %s36 = smul.u32 %s35, %s28
      %s37 = ssub.s32 %s34, %s36
      %p38 = scmp.eq.s32.totalorder %s37, 0
      %s40 = sadd.s32 %s39, 1
      %s41 = scalar_select %p38, %s39, %s40
      %p44 = pneg %p38
      %p45 = scmp.eq.s32.totalorder %s13, 1
      %p46 = por %p44, %p45
      %p47 = scmp.ne.s32.totalorder %s39, %s42
      %p48 = scmp.eq.s32.totalorder %s13, 0
      %p49 = por %p47, %p48
      %p50 = scmp.ne.s32.totalorder %s39, %s42
      %p51 = scmp.eq.s32.totalorder %s18, 1
      %p52 = por %p50, %p51
      %p53 = scmp.ne.s32.totalorder %s42, %s43
      %p54 = scmp.eq.s32.totalorder %s18, 0
      %p55 = por %p53, %p54
      %p56 = scmp.ne.s32.totalorder %s42, %s43
      %p57 = scmp.eq.s32.totalorder %s19, 1
      %p58 = por %p56, %p57
      %p60 = scmp.ne.s32.totalorder %s43, %s59
      %p61 = scmp.eq.s32.totalorder %s19, 0
      %p62 = por %p60, %p61
      %s63 = smul.u32 %s20, %s21
      %s64 = smul.u32 %s32, %s28
      %s65 = ssub.s32 %s63, %s64
      %p66 = scmp.eq.s32.totalorder %s65, 0
      %s68 = sadd.s32 %s67, 1
      %s69 = scalar_select %p66, %s67, %s68
      %p72 = pneg %p66
      %p73 = scmp.eq.s32.totalorder %s13, 1
      %p74 = por %p72, %p73
      %p75 = scmp.ne.s32.totalorder %s67, %s70
      %p76 = scmp.eq.s32.totalorder %s13, 0
      %p77 = por %p75, %p76
      %p78 = scmp.ne.s32.totalorder %s67, %s70
      %p79 = scmp.eq.s32.totalorder %s18, 1
      %p80 = por %p78, %p79
      %p81 = scmp.ne.s32.totalorder %s70, %s71
      %p82 = scmp.eq.s32.totalorder %s18, 0
      %p83 = por %p81, %p82
      %p84 = scmp.ne.s32.totalorder %s70, %s71
      %p85 = scmp.eq.s32.totalorder %s19, 1
      %p86 = por %p84, %p85
      %p88 = scmp.ne.s32.totalorder %s71, %s87
      %p89 = scmp.eq.s32.totalorder %s19, 0
      %p90 = por %p88, %p89
      %p91 = scmp.le.s32.totalorder 1, %s13
      %p92 = scmp.lt.s32.totalorder %s13, 3
      %p93 = pnand %p91, %p92
      %p94 = pneg %p93
      // Predicated region
      $region9: #{tpu_custom_call.1} parent=5 // pred_check
        _
      $region10: #{tpu_custom_call.1} parent=5 // pred_check_branch
        %96 = sbr.rel (%p93) target = $region12
      $region11: #{tpu_custom_call.1} parent=5 // pred_region
        %s97 = ssub.s32 %s13, 1
      $region12: #{tpu_custom_call.1} parent=5 // pred_fallthru
        _
      %p98 = scmp.lt.s32.totalorder %s13, 2
      // Predicated region
      $region13: #{tpu_custom_call.1} parent=5 // pred_check
        %p99 = pneg %p98
      $region14: #{tpu_custom_call.1} parent=5 // pred_check_branch
        %101 = sbr.rel (%p99) target = $region16
      $region15: #{tpu_custom_call.1} parent=5 // pred_region
        // Predicated region
        $region17: #{tpu_custom_call.1} parent=15 // pred_check
          %p102 = pneg %p49
        $region18: #{tpu_custom_call.1} parent=15 // pred_check_branch
          %104 = sbr.rel (%p102) target = $region20
        $region19: #{tpu_custom_call.1} parent=15 // pred_region
          %s105 = sand.u32 %s39, 1
          %s106 = scalar_lea.sflag [#allocation5], %s105
          %s107 = sand.u32 %s39, 1
          %s108 = smul.addr %s107, 16
          %s109 = scalar_lea.vmem [#allocation4], %s108
          %s110 = ssub.s32 1, %s20
          %s111 = smul.u32 %s110, %s21
          %113 = vsyncadd %s106, 0
          %s114 = smul.addr %s111, 2
          %s115 = smul.addr %s114, 8
          %s116 = scalar_lea.hbm %s0, %s115
          %s118 = sshll.u32 %s116, 4
          %s119 = int_to_ptr.hbm [resolvable:$true] %s118
          %s120 = sshll.u32 %s109, 4
          %s121 = int_to_ptr.vmem [resolvable:$true] %s120
          %123 = dma.hbm_to_vmem [thread:$0]  %s119, 256, %s121, %s106
        $region20: #{tpu_custom_call.1} parent=15 // pred_fallthru
          _
      $region16: #{tpu_custom_call.1} parent=5 // pred_fallthru
        _
      %p124 = scmp.le.s32.totalorder 1, %s13
      %p125 = scmp.lt.s32.totalorder %s13, 3
      %p126 = pnand %p124, %p125
      %p127 = pneg %p126
      // Predicated region
      $region21: #{tpu_custom_call.1} parent=5 // pred_check
        _
      $region22: #{tpu_custom_call.1} parent=5 // pred_check_branch
        %129 = sbr.rel (%p126) target = $region24
      $region23: #{tpu_custom_call.1} parent=5 // pred_region
        %s130 = ssub.s32 %s13, 1
        %s131 = sand.u32 %s42, 1
        %s132 = scalar_lea.sflag [#allocation5], %s131
        %s133 = sand.u32 %s42, 1
        %s134 = smul.addr %s133, 16
        %s135 = scalar_lea.vmem [#allocation4], %s134
        // Predicated region
        $region25: #{tpu_custom_call.1} parent=23 // pred_check
          %p136 = pneg %p55
        $region26: #{tpu_custom_call.1} parent=23 // pred_check_branch
          %138 = sbr.rel (%p136) target = $region28
        $region27: #{tpu_custom_call.1} parent=23 // pred_region
          %140 = dma.done %s132, 256
        $region28: #{tpu_custom_call.1} parent=23 // pred_fallthru
          _
        %s141 = sand.u32 %s42, 1
        %s142 = scalar_lea.sflag [#allocation5], %s141
        %s143 = sand.u32 %s42, 1
        %s144 = smul.addr %s143, 16
        %s145 = scalar_lea.vmem [#allocation4], %s144
        %p146 = pneg %p55
        %p147 = pneg %p52
        %p148 = pneg %p83
        %p149 = pneg %p80
        %s150 = sand.u32 %s70, 1
        %s151 = scalar_lea.sflag [#allocation6], %s150
        %s152 = sand.u32 %s70, 1
        %s153 = smul.addr %s152, 16
        %s154 = scalar_lea.vmem [#allocation7], %s153
        %s155 = ssub.s32 1, %s22
        %s156 = smul.u32 %s155, %s23
        %s157 = smul.u32 %s22, %s23
        %p158 = scmp.eq.s32.totalorder %s22, 0
        %p159 = scmp.eq.s32.totalorder %s23, 0
        %p160 = pnand %p158, %p159
        %p161 = pneg %p160
        // Predicated region
        $region29: #{tpu_custom_call.1} parent=23 // pred_check
          _
        $region30: #{tpu_custom_call.1} parent=23 // pred_check_branch
          %163 = sbr.rel (%p160) target = $region32
        $region31: #{tpu_custom_call.1} parent=23 // pred_region
          %v164 = vlaneseq
          %vm165 = vcmp.ge.s32.totalorder %v164, 0
          %vm166 = vcmp.lt.s32.totalorder %v164, 256
          %vm167 = vmand %vm165, %vm166
          %168 = vst.msk [vmem:[#allocation3] sm:$0x3] %vm167, 0.0
        $region32: #{tpu_custom_call.1} parent=23 // pred_fallthru
          _
        %s169 = smul.u32 %s23, 8
        // Predicated region
        $region33: #{tpu_custom_call.1} parent=23 // pred_check
          %p170 = pneg %p158
        $region34: #{tpu_custom_call.1} parent=23 // pred_check_branch
          %172 = sbr.rel (%p170) target = $region36
        $region35: #{tpu_custom_call.1} parent=23 // pred_region
          %v173 = vld [vmem:[%s135] sm:$0xff]
          %v174 = vld [vmem:[%s135 + $0x8] sm:$0xff]
          %s175 = sshra.s32 %s169, 3
          %s176 = sand.u32 %s169, 7
          %s177 = smul.u32 %s175, 2
          %s178 = smul.addr %s177, 8
          %s179 = scalar_lea.vmem [#allocation2], %s178
          %180 = vst [vmem:[%s179] sm:$0xff] %v173
          %181 = vst [vmem:[%s179 + $0x8] sm:$0xff] %v174
          %v182 = vld [vmem:[#allocation3] sm:$0x3]
          %v183 = vrot.slane %v173, 4
          %v184 = vadd.f32 %v173, %v183
          %v185 = vrot.slane %v184, 2
          %v186 = vadd.f32 %v184, %v185
          %v187 = vrot.slane %v186, 1
          %v188 = vadd.f32 %v186, %v187
          %v189 = vrot.slane %v174, 4
          %v190 = vadd.f32 %v174, %v189
          %v191 = vrot.slane %v190, 2
          %v192 = vadd.f32 %v190, %v191
          %v193 = vrot.slane %v192, 1
          %v194 = vadd.f32 %v192, %v193
          %v197 = vrot.slane %v194, 7
          %vm198 = vcmask 1040384
          %v199 = vsel %vm198, %v188, %v197
          %v201 = vadd.f32 %v182, %v199
          %v202 = vlaneseq
          %vm203 = vcmp.ge.s32.totalorder %v202, 0
          %vm204 = vcmp.lt.s32.totalorder %v202, 256
          %vm205 = vmand %vm203, %vm204
          %206 = vst.msk [vmem:[#allocation3] sm:$0x3] %vm205, %v201
        $region36: #{tpu_custom_call.1} parent=23 // pred_fallthru
          _
        %p207 = scmp.eq.s32.totalorder %s22, 1
        // Predicated region
        $region37: #{tpu_custom_call.1} parent=23 // pred_check
          %p208 = pneg %p207
        $region38: #{tpu_custom_call.1} parent=23 // pred_check_branch
          %210 = sbr.rel (%p208) target = $region40
        $region39: #{tpu_custom_call.1} parent=23 // pred_region
          %v211 = vld [vmem:[#allocation3] sm:$0x3]
          %v213 = vperm.slane %v211, 0
          %v214 = vperm.slane %v211, 1
          %vm217 = vcmask 1040384
          %v218 = vsel %vm217, %v213, 0.0
          %v219 = vsel %vm217, %v214, 0.0
          %v220 = vadd.f32 %v218, %v219
          %221 = vadd.xlane.f32.xlu0 %v220
          %v222 = vpop.xlane.xlu0 %221
          %v223 = vrot.slane %v222, 4
          %v224 = vadd.f32 %v222, %v223
          %v225 = vrot.slane %v224, 2
          %v226 = vadd.f32 %v224, %v225
          %v227 = vrot.slane %v226, 1
          %v228 = vadd.f32 %v226, %v227
          %s229 = vtos %v228
          %s230 = smul.f32 %s229, 0.00048828125
          %s231 = sshra.s32 %s169, 3
          %s232 = sand.u32 %s169, 7
          %s233 = smul.u32 %s231, 2
          %s234 = smul.addr %s233, 8
          %s235 = scalar_lea.vmem [#allocation2], %s234
          %v236 = vld [vmem:[%s235] sm:$0xff]
          %v237 = vld [vmem:[%s235 + $0x8] sm:$0xff]
          %v238 = vstv %s230
          %v239 = vsub.f32 %v236, %v238
          %v240 = vsub.f32 %v237, %v238
          %241 = vst [vmem:[%s154] sm:$0xff] %v239
          %242 = vst [vmem:[%s154 + $0x8] sm:$0xff] %v240
        $region40: #{tpu_custom_call.1} parent=23 // pred_fallthru
          _
        %s243 = sand.u32 %s70, 1
        %s244 = scalar_lea.sflag [#allocation6], %s243
        %s245 = sand.u32 %s70, 1
        %s246 = smul.addr %s245, 16
        %s247 = scalar_lea.vmem [#allocation7], %s246
        // Predicated region
        $region41: #{tpu_custom_call.1} parent=23 // pred_check
          %p248 = pneg %p80
        $region42: #{tpu_custom_call.1} parent=23 // pred_check_branch
          %250 = sbr.rel (%p248) target = $region44
        $region43: #{tpu_custom_call.1} parent=23 // pred_region
          %s251 = smul.u32 %s22, %s23
          %253 = vsyncadd %s244, 0
          %s254 = smul.addr %s251, 2
          %s255 = smul.addr %s254, 8
          %s256 = scalar_lea.hbm %s1, %s255
          %s258 = sshll.u32 %s247, 4
          %s259 = int_to_ptr.vmem [resolvable:$true] %s258
          %s260 = sshll.u32 %s256, 4
          %s261 = int_to_ptr.hbm [resolvable:$true] %s260
          %263 = dma.vmem_to_hbm [thread:$0]  %s259, 256, %s261, %s244
        $region44: #{tpu_custom_call.1} parent=23 // pred_fallthru
          _
      $region24: #{tpu_custom_call.1} parent=5 // pred_fallthru
        _
      %p264 = scmp.le.s32.totalorder 2, %s13
      // Predicated region
      $region45: #{tpu_custom_call.1} parent=5 // pred_check
        %p265 = pneg %p264
      $region46: #{tpu_custom_call.1} parent=5 // pred_check_branch
        %267 = sbr.rel (%p265) target = $region48
      $region47: #{tpu_custom_call.1} parent=5 // pred_region
        %s268 = ssub.s32 %s13, 2
        // Predicated region
        $region49: #{tpu_custom_call.1} parent=47 // pred_check
          %p269 = pneg %p86
        $region50: #{tpu_custom_call.1} parent=47 // pred_check_branch
          %271 = sbr.rel (%p269) target = $region52
        $region51: #{tpu_custom_call.1} parent=47 // pred_region
          %s272 = sand.u32 %s71, 1
          %s273 = scalar_lea.sflag [#allocation6], %s272
          %s274 = sand.u32 %s71, 1
          %s275 = smul.addr %s274, 16
          %s276 = scalar_lea.vmem [#allocation7], %s275
          %278 = dma.done %s273, 256
        $region52: #{tpu_custom_call.1} parent=47 // pred_fallthru
          _
      $region48: #{tpu_custom_call.1} parent=5 // pred_fallthru
        _
    $region6: #{tpu_custom_call.1} parent=1 // loop_footer
      %s17 = sadd.s32 1, %s13
    $region7: #{tpu_custom_call.1} parent=1 // loop_footer_branch
      %12 = sbr.rel target = $region3
    $region8: #{tpu_custom_call.1} parent=1 // loop_exit
      _
    %279 = vsyncpa [#allocation5], 1
    %s280 = scalar_lea.sflag [#allocation5], 1
    %281 = vsyncpa %s280, 1
    %282 = vsyncpa [#allocation6], 1
    %s283 = scalar_lea.sflag [#allocation6], 1
    %284 = vsyncpa %s283, 1

</llo_original>
